<compile_context>
chip_gen: v6e
topology: v6e:2x2x1
jax: 0.10.0
libtpu: 0.0.40
codegen_flags: <defaults>
</compile_context>

<pallas_src>
import jax
import jax.numpy as jnp
from jax.experimental import pallas as pl
from jax.experimental.pallas import tpu as pltpu


def _round_up(x, k):
    return ((x + k - 1) // k) * k


def _vmem_budget_and_limit():
    """Per-chip VMEM tile budget and scoped-VMEM limit (bytes)."""
    try:
        cap = int(pltpu.get_tpu_info().vmem_capacity_bytes)
    except Exception:
        cap = 64 * 1024 * 1024  # conservative: assume v7x-sized VMEM
    budget = min(24 * 1024 * 1024, cap // 3)       # bytes for all live tiles
    limit = min(budget + 4 * 1024 * 1024, cap // 2)  # headroom for scratch
    return budget, limit


def _choose_layout(total):
    """Pick a lane-dense (M, D) flattening of `total` elements.

    Returns (m, d, pad) where pad is the number of trailing zero elements to
    append to the flattened input so that m * d == total + pad.
    """
    for d in (2048, 1536, 1024, 768, 512, 384, 256, 128):
        if total % d == 0:
            return total // d, d, 0
    # total not divisible by 128: pad in the wrapper so stores stay lane-dense
    # (masked sub-128 stores cost far more than the tiny extra DMA).
    d = 512
    padded = _round_up(total, d)
    return padded // d, d, padded - total


def _choose_tile_rows(m, d, n_inputs, itemsize, budget_bytes, sublane):
    """Largest sublane-aligned row tile fitting all double-buffered operands."""
    if m <= sublane:
        return m  # full-extent block (legal even when not 8-aligned)
    # 2 buffers per input + 2 buffers for the output tile, at real itemsize.
    per_row = (2 * n_inputs + 2) * d * int(itemsize)
    tm = max(sublane, budget_bytes // per_row)
    # Cap so the grid has >= 2 steps: v7x has 2 TensorCores and the "parallel"
    # axis can only shard when there is more than one step.
    half = _round_up((m + 1) // 2, sublane)
    tm = min(tm, half)
    tm = max((tm // sublane) * sublane, sublane)
    return min(tm, m)


def _make_sum_kernel(n_inputs, acc_dtype):
    def kernel(*refs):
        out_ref = refs[n_inputs]
        vals = [refs[i][...].astype(acc_dtype) for i in range(n_inputs)]
        # Pairwise tree sum: shortens the VALU dependency chain for large N.
        while len(vals) > 1:
            nxt = [vals[j] + vals[j + 1] for j in range(0, len(vals) - 1, 2)]
            if len(vals) % 2:
                nxt.append(vals[-1])
            vals = nxt
        out_ref[...] = vals[0].astype(out_ref.dtype)
    return kernel


def default_reduction(x_s):
    """JAX/Pallas equivalent of DefaultReductionModule.forward(x_s)."""
    x_s = list(x_s)
    n = len(x_s)
    elem_shape = x_s[0].shape
    dtype = x_s[0].dtype
    itemsize = int(jnp.dtype(dtype).itemsize)

    total = 1
    for s in elem_shape:
        total *= s

    m, d, pad = _choose_layout(total)
    if pad:
        x_flat = [
            jnp.pad(jnp.reshape(x, (total,)), (0, pad)).reshape(m, d) for x in x_s
        ]
    else:
        x_flat = [jnp.reshape(x, (m, d)) for x in x_s]

    acc_dtype = jnp.int32 if jnp.issubdtype(dtype, jnp.integer) else jnp.float32

    budget, vmem_limit = _vmem_budget_and_limit()
    sublane = max(8, 32 // max(itemsize, 1))  # 8 (f32) / 16 (bf16) / 32 (int8)
    tm = _choose_tile_rows(m, d, n, itemsize, budget, sublane)
    grid = (pl.cdiv(m, tm),)

    cost = pl.CostEstimate(
        flops=max(n - 1, 1) * total,
        transcendentals=0,
        bytes_accessed=(n + 1) * total * itemsize,
    )

    out_flat = pl.pallas_call(
        _make_sum_kernel(n, acc_dtype),
        out_shape=jax.ShapeDtypeStruct((m, d), dtype),
        grid_spec=pltpu.PrefetchScalarGridSpec(
            num_scalar_prefetch=0,
            grid=grid,
            in_specs=[pl.BlockSpec((tm, d), lambda i: (i, 0)) for _ in range(n)],
            out_specs=pl.BlockSpec((tm, d), lambda i: (i, 0)),
        ),
        compiler_params=pltpu.CompilerParams(
            # Each row tile is independent (the N-way reduction happens inside
            # one grid step), so the only grid axis shards across TensorCores.
            dimension_semantics=("parallel",),
            vmem_limit_bytes=vmem_limit,
        ),
        cost_estimate=cost,
    )(*x_flat)

    if pad:
        return out_flat.reshape(-1)[:total].reshape(elem_shape)
    return out_flat.reshape(elem_shape)


if __name__ == "__main__":
    key = jax.random.PRNGKey(0)
    n_inputs = 4
    shape = (2, 4, 16, 16)  # NCHW, small conv feature map

    keys = jax.random.split(key, n_inputs)
    x_s = [jax.random.normal(k, shape, dtype=jnp.float32) for k in keys]

    out = default_reduction(x_s)
    out = jax.block_until_ready(out)

    ref = jnp.sum(jnp.stack(x_s), axis=0)
    assert out.shape == shape, out.shape
    assert jnp.allclose(out, ref, atol=1e-5, rtol=1e-5)

    # Exercise the non-128-divisible (padded) layout path as well.
    shape2 = (3, 5, 7)
    keys2 = jax.random.split(jax.random.PRNGKey(1), 3)
    y_s = [jax.random.normal(k, shape2, dtype=jnp.float32) for k in keys2]
    out2 = jax.block_until_ready(default_reduction(y_s))
    ref2 = jnp.sum(jnp.stack(y_s), axis=0)
    assert out2.shape == shape2, out2.shape
    assert jnp.allclose(out2, ref2, atol=1e-5, rtol=1e-5)

    print("KERNEL_OK")
</pallas_src>

<mosaic_0001>
module attributes {stable_mosaic.version = 11 : i64} {
  func.func @kernel(%arg0: i32, %arg1: memref<1x2048xf32, #tpu.memory_space<vmem>>, %arg2: memref<1x2048xf32, #tpu.memory_space<vmem>>, %arg3: memref<1x2048xf32, #tpu.memory_space<vmem>>, %arg4: memref<1x2048xf32, #tpu.memory_space<vmem>>, %arg5: memref<1x2048xf32, #tpu.memory_space<vmem>>) attributes {dimension_semantics = [#tpu.dimension_semantics<parallel>], iteration_bounds = array<i64: 1>, scalar_prefetch = 0 : i64, scratch_operands = 0 : i64, tpu.core_type = #tpu.core_type<tc>, window_params = [{transform_indices = @transform_0, window_bounds = array<i64: 1, 2048>}, {transform_indices = @transform_1, window_bounds = array<i64: 1, 2048>}, {transform_indices = @transform_2, window_bounds = array<i64: 1, 2048>}, {transform_indices = @transform_3, window_bounds = array<i64: 1, 2048>}, {transform_indices = @transform_4, window_bounds = array<i64: 1, 2048>}]} {
    %c0 = arith.constant 0 : index
    %c0_0 = arith.constant 0 : index
    %0 = vector.load %arg1[%c0, %c0_0] : memref<1x2048xf32, #tpu.memory_space<vmem>>, vector<1x2048xf32>
    %c0_1 = arith.constant 0 : index
    %c0_2 = arith.constant 0 : index
    %1 = vector.load %arg2[%c0_1, %c0_2] : memref<1x2048xf32, #tpu.memory_space<vmem>>, vector<1x2048xf32>
    %c0_3 = arith.constant 0 : index
    %c0_4 = arith.constant 0 : index
    %2 = vector.load %arg3[%c0_3, %c0_4] : memref<1x2048xf32, #tpu.memory_space<vmem>>, vector<1x2048xf32>
    %c0_5 = arith.constant 0 : index
    %c0_6 = arith.constant 0 : index
    %3 = vector.load %arg4[%c0_5, %c0_6] : memref<1x2048xf32, #tpu.memory_space<vmem>>, vector<1x2048xf32>
    %4 = arith.addf %0, %1 : vector<1x2048xf32>
    %5 = arith.addf %2, %3 : vector<1x2048xf32>
    %6 = arith.addf %4, %5 : vector<1x2048xf32>
    %c0_7 = arith.constant 0 : index
    %c0_8 = arith.constant 0 : index
    %7 = vector.load %arg5[%c0_7, %c0_8] : memref<1x2048xf32, #tpu.memory_space<vmem>>, vector<1x2048xf32>
    tpu.vector_store %arg5[%c0_7, %c0_8], %6 {strides = array<i32>} : memref<1x2048xf32, #tpu.memory_space<vmem>>, vector<1x2048xf32>,
    return
  }
  func.func @transform_0(%arg0: i32) -> (i32, i32) {
    %c0_i32 = arith.constant 0 : i32
    %c0_i32_0 = arith.constant 0 : i32
    return %arg0, %c0_i32 : i32, i32
  }
  func.func @transform_1(%arg0: i32) -> (i32, i32) {
    %c0_i32 = arith.constant 0 : i32
    %c0_i32_0 = arith.constant 0 : i32
    return %arg0, %c0_i32 : i32, i32
  }
  func.func @transform_2(%arg0: i32) -> (i32, i32) {
    %c0_i32 = arith.constant 0 : i32
    %c0_i32_0 = arith.constant 0 : i32
    return %arg0, %c0_i32 : i32, i32
  }
  func.func @transform_3(%arg0: i32) -> (i32, i32) {
    %c0_i32 = arith.constant 0 : i32
    %c0_i32_0 = arith.constant 0 : i32
    return %arg0, %c0_i32 : i32, i32
  }
  func.func @transform_4(%arg0: i32) -> (i32, i32) {
    %c0_i32 = arith.constant 0 : i32
    %c0_i32_0 = arith.constant 0 : i32
    return %arg0, %c0_i32 : i32, i32
  }
}

</mosaic_0001>

<llo_original>
// kernel: tpu_custom_call.1
$region0: #{tpu_custom_call.1}
  #allocation0 [shape = 'u32[]', space=smem, size = 0x4, offset = 0x4, fixed_abs, tag = 'smem constant byte address 0x4 - core index']
  #allocation1 [shape = 'u32[144,128]{1,0:T(1,128)}', space=vmem, size = 0x12000, scoped, tag = 'internal scratch']
  %s0 = inlined_call_operand.hbm [shape: f32[1,2048], index: 0, kind: input, shape index: {}]
  %s1 = inlined_call_operand.hbm [shape: f32[1,2048], index: 1, kind: input, shape index: {}]
  %s2 = inlined_call_operand.hbm [shape: f32[1,2048], index: 2, kind: input, shape index: {}]
  %s3 = inlined_call_operand.hbm [shape: f32[1,2048], index: 3, kind: input, shape index: {}]
  %s4 = inlined_call_operand.hbm [shape: f32[1,2048], index: 4, kind: output, shape index: {}]
  %s5 = sld [smem:[#allocation0]]
  $region42: #{tpu_custom_call.1} parent=0
    _
  %s7 = ssub.s32 1, %s5
  %s8 = scalar_select 0, %s7, %s5
  $region1: #{tpu_custom_call.1} parent=0
    #allocation2 [shape = 'u8[8192]{0}', space=vmem, size = 0x2000, scoped, tag = 'input window, operand 0, single buffered']
    #allocation3 [shape = 's32[1]{0}', space=sflag, size = 0x4, scoped, tag = 'scoped memory for tpu_custom_call.1']
    #allocation4 [shape = 's32[1]{0}', space=sflag, size = 0x4, scoped, tag = 'scoped memory for tpu_custom_call.1']
    #allocation5 [shape = 'u8[8192]{0}', space=vmem, size = 0x2000, scoped, tag = 'input window, operand 1, single buffered']
    #allocation6 [shape = 's32[1]{0}', space=sflag, size = 0x4, scoped, tag = 'scoped memory for tpu_custom_call.1']
    #allocation7 [shape = 'u8[8192]{0}', space=vmem, size = 0x2000, scoped, tag = 'input window, operand 2, single buffered']
    #allocation8 [shape = 'u8[8192]{0}', space=vmem, size = 0x2000, scoped, tag = 'input window, operand 3, single buffered']
    #allocation9 [shape = 's32[1]{0}', space=sflag, size = 0x4, scoped, tag = 'scoped memory for tpu_custom_call.1']
    #allocation10 [shape = 'u8[8192]{0}', space=vmem, size = 0x2000, scoped, tag = 'output window, operand 0, single buffered']
    %9 = vsyncpa [#allocation3], 0
    %10 = vsyncpa [#allocation6], 0
    %11 = vsyncpa [#allocation9], 0
    %12 = vsyncpa [#allocation4], 0
    // Predicated region
    $region2: #{tpu_custom_call.1} parent=1 // pred_check
      _
    $region3: #{tpu_custom_call.1} parent=1 // pred_check_branch
      %14 = sbr.rel (0) target = $region5
    $region4: #{tpu_custom_call.1} parent=1 // pred_region
      %s16 = ssub.s32 256, 256
      %17 = vsyncadd [#allocation3], %s16
      %s19 = sshll.u32 [#allocation2], 4
      %s20 = int_to_ptr.vmem [resolvable:$true] %s19
      %22 = dma.hbm_to_vmem [thread:$0]  %s0, 256, %s20, [#allocation3]
    $region5: #{tpu_custom_call.1} parent=1 // pred_fallthru
      _
    // Predicated region
    $region6: #{tpu_custom_call.1} parent=1 // pred_check
      _
    $region7: #{tpu_custom_call.1} parent=1 // pred_check_branch
      %24 = sbr.rel (0) target = $region9
    $region8: #{tpu_custom_call.1} parent=1 // pred_region
      %s26 = ssub.s32 256, 256
      %27 = vsyncadd [#allocation6], %s26
      %s29 = sshll.u32 [#allocation5], 4
      %s30 = int_to_ptr.vmem [resolvable:$true] %s29
      %32 = dma.hbm_to_vmem [thread:$0]  %s1, 256, %s30, [#allocation6]
    $region9: #{tpu_custom_call.1} parent=1 // pred_fallthru
      _
    // Predicated region
    $region10: #{tpu_custom_call.1} parent=1 // pred_check
      _
    $region11: #{tpu_custom_call.1} parent=1 // pred_check_branch
      %34 = sbr.rel (0) target = $region13
    $region12: #{tpu_custom_call.1} parent=1 // pred_region
      %s36 = ssub.s32 256, 256
      %37 = vsyncadd [#allocation6], %s36
      %s39 = sshll.u32 [#allocation7], 4
      %s40 = int_to_ptr.vmem [resolvable:$true] %s39
      %42 = dma.hbm_to_vmem [thread:$0]  %s2, 256, %s40, [#allocation6]
    $region13: #{tpu_custom_call.1} parent=1 // pred_fallthru
      _
    // Predicated region
    $region14: #{tpu_custom_call.1} parent=1 // pred_check
      _
    $region15: #{tpu_custom_call.1} parent=1 // pred_check_branch
      %44 = sbr.rel (0) target = $region17
    $region16: #{tpu_custom_call.1} parent=1 // pred_region
      %s46 = ssub.s32 256, 256
      %47 = vsyncadd [#allocation9], %s46
      %s49 = sshll.u32 [#allocation8], 4
      %s50 = int_to_ptr.vmem [resolvable:$true] %s49
      %52 = dma.hbm_to_vmem [thread:$0]  %s3, 256, %s50, [#allocation9]
    $region17: #{tpu_custom_call.1} parent=1 // pred_fallthru
      _
    // Predicated region
    $region18: #{tpu_custom_call.1} parent=1 // pred_check
      _
    $region19: #{tpu_custom_call.1} parent=1 // pred_check_branch
      %54 = sbr.rel (0) target = $region21
    $region20: #{tpu_custom_call.1} parent=1 // pred_region
      %55 = dma.done [#allocation3], 256
    $region21: #{tpu_custom_call.1} parent=1 // pred_fallthru
      _
    // Predicated region
    $region22: #{tpu_custom_call.1} parent=1 // pred_check
      _
    $region23: #{tpu_custom_call.1} parent=1 // pred_check_branch
      %57 = sbr.rel (0) target = $region25
    $region24: #{tpu_custom_call.1} parent=1 // pred_region
      %58 = dma.done [#allocation6], 256
    $region25: #{tpu_custom_call.1} parent=1 // pred_fallthru
      _
    // Predicated region
    $region26: #{tpu_custom_call.1} parent=1 // pred_check
      _
    $region27: #{tpu_custom_call.1} parent=1 // pred_check_branch
      %60 = sbr.rel (0) target = $region29
    $region28: #{tpu_custom_call.1} parent=1 // pred_region
      %61 = dma.done [#allocation6], 256
    $region29: #{tpu_custom_call.1} parent=1 // pred_fallthru
      _
    // Predicated region
    $region30: #{tpu_custom_call.1} parent=1 // pred_check
      _
    $region31: #{tpu_custom_call.1} parent=1 // pred_check_branch
      %63 = sbr.rel (0) target = $region33
    $region32: #{tpu_custom_call.1} parent=1 // pred_region
      %64 = dma.done [#allocation9], 256
    $region33: #{tpu_custom_call.1} parent=1 // pred_fallthru
      _
    %v65 = vld [vmem:[#allocation2] sm:$0xff]
    %v66 = vld [vmem:[#allocation2 + $0x8] sm:$0xff]
    %v67 = vld [vmem:[#allocation5] sm:$0xff]
    %v68 = vld [vmem:[#allocation5 + $0x8] sm:$0xff]
    %v69 = vld [vmem:[#allocation7] sm:$0xff]
    %v70 = vld [vmem:[#allocation7 + $0x8] sm:$0xff]
    %v71 = vld [vmem:[#allocation8] sm:$0xff]
    %v72 = vld [vmem:[#allocation8 + $0x8] sm:$0xff]
    %v73 = vadd.f32 %v65, %v67
    %v74 = vadd.f32 %v66, %v68
    %v75 = vadd.f32 %v69, %v71
    %v76 = vadd.f32 %v70, %v72
    %v77 = vadd.f32 %v73, %v75
    %v78 = vadd.f32 %v74, %v76
    %79 = vst [vmem:[#allocation10] sm:$0xff] %v77
    %80 = vst [vmem:[#allocation10 + $0x8] sm:$0xff] %v78
    // Predicated region
    $region34: #{tpu_custom_call.1} parent=1 // pred_check
      _
    $region35: #{tpu_custom_call.1} parent=1 // pred_check_branch
      %82 = sbr.rel (0) target = $region37
    $region36: #{tpu_custom_call.1} parent=1 // pred_region
      %s84 = ssub.s32 256, 256
      %85 = vsyncadd [#allocation4], %s84
      %s87 = sshll.u32 [#allocation10], 4
      %s88 = int_to_ptr.vmem [resolvable:$true] %s87
      %90 = dma.vmem_to_hbm [thread:$0]  %s88, 256, %s4, [#allocation4]
    $region37: #{tpu_custom_call.1} parent=1 // pred_fallthru
      _
    // Predicated region
    $region38: #{tpu_custom_call.1} parent=1 // pred_check
      _
    $region39: #{tpu_custom_call.1} parent=1 // pred_check_branch
      %92 = sbr.rel (0) target = $region41
    $region40: #{tpu_custom_call.1} parent=1 // pred_region
      %93 = dma.done [#allocation4], 256
    $region41: #{tpu_custom_call.1} parent=1 // pred_fallthru
      _
    %94 = vsyncpa [#allocation3], 1
    %95 = vsyncpa [#allocation6], 1
    %96 = vsyncpa [#allocation9], 1
    %97 = vsyncpa [#allocation4], 1

</llo_original>
